<compile_context>
chip_gen: v5e
topology: v5e:2x2
jax: 0.10.0
libtpu: 0.0.40
codegen_flags: <defaults>
</compile_context>

<pallas_src>
import functools

import jax
import jax.numpy as jnp
from jax import lax
from jax.experimental import pallas as pl
from jax.experimental.pallas import tpu as pltpu

EPS = 1e-5
NEG_SLOPE = 0.01

IN_FEATURES = 28 * 28
F1 = 128            # fc1 width (already lane-dense)
F2P = 128           # fc2 width padded 64 -> 128
F3P = 128           # fc3 width padded 10 -> 128
OUT_CLASSES = 10

VMEM_LIMIT = 48 * 1024 * 1024   # fits v7x's 64 MiB physical; > v5e's 16 MiB default


def _round_up(n, m):
    return (n + m - 1) // m * m


def _leaky(x):
    return jnp.where(x >= 0, x, NEG_SLOPE * x)


def _row_mask(n_rows, row_offset, n_valid):
    rows = row_offset + lax.broadcasted_iota(jnp.int32, (n_rows, 1), 0)
    return (rows < n_valid).astype(jnp.float32)


def _batch_stats(h, mask):
    """Single-pass (masked) per-feature sum and sum-of-squares over the batch axis."""
    hm = h if mask is None else h * mask
    ssum = jnp.sum(hm, axis=0, keepdims=True)
    ssq = jnp.sum(hm * h, axis=0, keepdims=True)
    return ssum, ssq


def _fold_bn(ssum, ssq, gamma, beta, n_valid):
    """Fold training-mode BatchNorm1d into a per-feature scale/shift (f32)."""
    inv_n = 1.0 / n_valid
    mu = ssum * inv_n
    var = jnp.maximum(ssq * inv_n - mu * mu, 0.0)
    scale = gamma * lax.rsqrt(var + EPS)
    shift = beta - mu * scale
    return scale, shift


# --------------------------------------------------------------------------- #
# Kernels
# --------------------------------------------------------------------------- #
def _fused_kernel(x_ref,
                  w1_ref, b1_ref, g1_ref, be1_ref,
                  w2_ref, b2_ref, g2_ref, be2_ref,
                  w3_ref, b3_ref,
                  o_ref, *, b_true, b_pad):
    """Whole-batch fused forward (small/medium B): everything resident in VMEM."""
    x = x_ref[...].astype(jnp.bfloat16)                                # cast in-kernel
    mask = None if b_true == b_pad else _row_mask(b_pad, 0, b_true)

    # fc1 + BN1 (folded scale/shift) + leaky
    h1 = jnp.dot(x, w1_ref[...], preferred_element_type=jnp.float32) + b1_ref[...]
    s1, q1 = _batch_stats(h1, mask)
    sc1, sh1 = _fold_bn(s1, q1, g1_ref[...], be1_ref[...], b_true)
    a1 = _leaky(h1 * sc1 + sh1)

    # fc2 + BN2 + leaky (features padded to 128 lanes; padded lanes stay exactly 0)
    h2 = (jnp.dot(a1.astype(jnp.bfloat16), w2_ref[...],
                  preferred_element_type=jnp.float32) + b2_ref[...])
    s2, q2 = _batch_stats(h2, mask)
    sc2, sh2 = _fold_bn(s2, q2, g2_ref[...], be2_ref[...], b_true)
    a2 = _leaky(h2 * sc2 + sh2)

    # fc3 — lane-dense 128-wide output slab; caller slices [:, :10]
    o_ref[...] = (jnp.dot(a2.astype(jnp.bfloat16), w3_ref[...],
                          preferred_element_type=jnp.float32) + b3_ref[...])


def _fc1_stats_kernel(x_ref, w_ref, b_ref, h_ref, stats_ref,
                      *, tile_rows, b_true, masked):
    """Tiled phase 1: h1 = x @ W1 + b1 (f32 acc), partial BN1 stats, h1 stored bf16."""
    x = x_ref[...].astype(jnp.bfloat16)                                # f32 in HBM, bf16 on MXU
    h = jnp.dot(x, w_ref[...], preferred_element_type=jnp.float32) + b_ref[...]
    mask = (_row_mask(tile_rows, pl.program_id(0) * tile_rows, b_true)
            if masked else None)
    ssum, ssq = _batch_stats(h, mask)
    stats_ref[...] = jnp.concatenate([ssum, ssq], axis=0)              # single (2,128) store
    h_ref[...] = h.astype(jnp.bfloat16)                                # bf16 round trip


def _bn1_fc2_stats_kernel(h1_ref, sc1_ref, sh1_ref, w2_ref, b2_ref, stats_ref,
                          *, tile_rows, b_true, masked):
    """Tiled phase 2 (stats only): a1 = leaky(bn1(h1)); h2 = a1 @ W2 + b2 in-register;
    emit only the per-tile partial BN2 stats — h2 never touches HBM."""
    a1 = _leaky(h1_ref[...].astype(jnp.float32) * sc1_ref[...] + sh1_ref[...])
    h2 = (jnp.dot(a1.astype(jnp.bfloat16), w2_ref[...],
                  preferred_element_type=jnp.float32) + b2_ref[...])
    mask = (_row_mask(tile_rows, pl.program_id(0) * tile_rows, b_true)
            if masked else None)
    ssum, ssq = _batch_stats(h2, mask)
    stats_ref[...] = jnp.concatenate([ssum, ssq], axis=0)


def _bn1_fc2_bn2_fc3_kernel(h1_ref, sc1_ref, sh1_ref, w2_ref, b2_ref,
                            sc2_ref, sh2_ref, w3_ref, b3_ref, o_ref):
    """Tiled phase 3: re-read h1, recompute a1/h2, apply bn2 + leaky, fc3 (lane-dense)."""
    a1 = _leaky(h1_ref[...].astype(jnp.float32) * sc1_ref[...] + sh1_ref[...])
    h2 = (jnp.dot(a1.astype(jnp.bfloat16), w2_ref[...],
                  preferred_element_type=jnp.float32) + b2_ref[...])
    a2 = _leaky(h2 * sc2_ref[...] + sh2_ref[...])
    o_ref[...] = (jnp.dot(a2.astype(jnp.bfloat16), w3_ref[...],
                          preferred_element_type=jnp.float32) + b3_ref[...])


# --------------------------------------------------------------------------- #
# Params
# --------------------------------------------------------------------------- #
def init_params(key):
    """Deterministic PyTorch-style init. Linear weights stored transposed: (in, out)."""
    ks = jax.random.split(key, 6)

    def linear(kw, kb, fan_in, fan_out):
        bound = 1.0 / jnp.sqrt(fan_in)
        w = jax.random.uniform(kw, (fan_in, fan_out), jnp.float32, -bound, bound)
        b = jax.random.uniform(kb, (1, fan_out), jnp.float32, -bound, bound)
        return w, b

    w1, b1 = linear(ks[0], ks[1], IN_FEATURES, 128)
    w2, b2 = linear(ks[2], ks[3], 128, 64)
    w3, b3 = linear(ks[4], ks[5], 64, OUT_CLASSES)
    return dict(
        w1=w1, b1=b1, g1=jnp.ones((1, 128), jnp.float32), be1=jnp.zeros((1, 128), jnp.float32),
        w2=w2, b2=b2, g2=jnp.ones((1, 64), jnp.float32), be2=jnp.zeros((1, 64), jnp.float32),
        w3=w3, b3=b3,
    )


def _pad_cols(a, n):
    return jnp.pad(a, ((0, 0), (0, n - a.shape[1])))


def prepare_params(params):
    """Pre-pack params: bf16 MXU operands, lane-dense (128-wide) padding of layers 2/3."""
    p = {}
    p["w1"] = params["w1"].astype(jnp.bfloat16)                    # (784, 128)
    p["b1"], p["g1"], p["be1"] = params["b1"], params["g1"], params["be1"]

    p["w2"] = _pad_cols(params["w2"], F2P).astype(jnp.bfloat16)    # (128, 128)
    p["b2"] = _pad_cols(params["b2"], F2P)
    p["g2"] = _pad_cols(params["g2"], F2P)                         # padded gamma = 0 -> lanes stay 0
    p["be2"] = _pad_cols(params["be2"], F2P)

    w3 = jnp.pad(params["w3"], ((0, F2P - params["w3"].shape[0]),
                                (0, F3P - params["w3"].shape[1])))
    p["w3"] = w3.astype(jnp.bfloat16)                              # (128, 128)
    p["b3"] = _pad_cols(params["b3"], F3P)
    return p


# --------------------------------------------------------------------------- #
# Forward
# --------------------------------------------------------------------------- #
def batchnorm_model_forward(x_nchw, prepared, *, tile_rows=1024, fused_max_rows=4096,
                            vmem_limit_bytes=VMEM_LIMIT):
    """Forward pass. B <= fused_max_rows: one fused VMEM-resident kernel.
    Larger batches: batch-tiled 3-call pipeline with full-batch (two-phase) BN stats
    and no h2 HBM round trip (recompute in phase 3)."""
    B = x_nchw.shape[0]
    x = x_nchw.reshape(B, IN_FEATURES).astype(jnp.float32)          # x.view(-1, 784); f32 to kernels
    p = prepared

    # ---------------- fused path (everything resident in VMEM) ----------------
    if B <= fused_max_rows:
        b_pad = _round_up(max(B, 8), 8)
        x_pad = x if b_pad == B else jnp.pad(x, ((0, b_pad - B), (0, 0)))
        args = (x_pad, p["w1"], p["b1"], p["g1"], p["be1"],
                p["w2"], p["b2"], p["g2"], p["be2"], p["w3"], p["b3"])
        vmem = pl.BlockSpec(memory_space=pltpu.MemorySpace.VMEM)
        flops = 2 * b_pad * (IN_FEATURES * F1 + F1 * F2P + F2P * F3P)
        bytes_acc = int(x_pad.size * 4 + b_pad * F3P * 4
                        + sum(int(v.size) * v.dtype.itemsize for v in args[1:]))
        out = pl.pallas_call(
            functools.partial(_fused_kernel, b_true=B, b_pad=b_pad),
            out_shape=jax.ShapeDtypeStruct((b_pad, F3P), jnp.float32),
            in_specs=[vmem] * len(args),
            out_specs=vmem,
            compiler_params=pltpu.CompilerParams(vmem_limit_bytes=vmem_limit_bytes),
            cost_estimate=pl.CostEstimate(flops=flops, transcendentals=2 * F1,
                                          bytes_accessed=bytes_acc),
        )(*args)
        return out[:B, :OUT_CLASSES]

    # ---------------- batch-tiled path (two-phase BN, recompute fc2) ----------------
    tb = _round_up(max(tile_rows, 16), 16)        # bf16 sublane-packing friendly
    tb = min(tb, _round_up(B, 16))                # never tile wider than the batch
    b_pad = _round_up(B, tb)
    nt = b_pad // tb
    masked = (b_pad != B)
    x_pad = x if b_pad == B else jnp.pad(x, ((0, b_pad - B), (0, 0)))  # f32, no cast copy

    par = pltpu.CompilerParams(dimension_semantics=("parallel",),
                               vmem_limit_bytes=vmem_limit_bytes)
    row_spec = lambda f: pl.BlockSpec((tb, f), lambda i: (i, 0))
    const2d = lambda shape: pl.BlockSpec(shape, lambda i: (0, 0))
    stats_spec = pl.BlockSpec((pl.Squeezed(), 2, 128), lambda i: (i, 0, 0))

    # phase 1: fc1 tiles + partial stats; h1 stored bf16
    h1, st1 = pl.pallas_call(
        functools.partial(_fc1_stats_kernel, tile_rows=tb, b_true=B, masked=masked),
        grid=(nt,),
        in_specs=[row_spec(IN_FEATURES), const2d((IN_FEATURES, F1)), const2d((1, F1))],
        out_specs=(row_spec(F1), stats_spec),
        out_shape=(jax.ShapeDtypeStruct((b_pad, F1), jnp.bfloat16),
                   jax.ShapeDtypeStruct((nt, 2, F1), jnp.float32)),
        compiler_params=par,
        cost_estimate=pl.CostEstimate(
            flops=2 * b_pad * IN_FEATURES * F1, transcendentals=0,
            bytes_accessed=int(x_pad.size * 4 + p["w1"].size * 2
                               + b_pad * F1 * 2 + nt * 2 * F1 * 4)),
    )(x_pad, p["w1"], p["b1"])
    s1 = jnp.sum(st1, axis=0)                       # (2, 128) — full-batch sums
    sc1, sh1 = _fold_bn(s1[0:1], s1[1:2], p["g1"], p["be1"], B)

    # phase 2: bn1 + leaky + fc2 stats ONLY (h2 never written to HBM)
    st2 = pl.pallas_call(
        functools.partial(_bn1_fc2_stats_kernel, tile_rows=tb, b_true=B, masked=masked),
        grid=(nt,),
        in_specs=[row_spec(F1), const2d((1, F1)), const2d((1, F1)),
                  const2d((F1, F2P)), const2d((1, F2P))],
        out_specs=stats_spec,
        out_shape=jax.ShapeDtypeStruct((nt, 2, F2P), jnp.float32),
        compiler_params=par,
        cost_estimate=pl.CostEstimate(
            flops=2 * b_pad * F1 * F2P, transcendentals=0,
            bytes_accessed=int(b_pad * F1 * 2 + p["w2"].size * 2 + nt * 2 * F2P * 4)),
    )(h1, sc1, sh1, p["w2"], p["b2"])
    s2 = jnp.sum(st2, axis=0)
    sc2, sh2 = _fold_bn(s2[0:1], s2[1:2], p["g2"], p["be2"], B)

    # phase 3: re-read h1, recompute a1/h2, bn2 + leaky + fc3 (lane-dense logits)
    logits = pl.pallas_call(
        _bn1_fc2_bn2_fc3_kernel,
        grid=(nt,),
        in_specs=[row_spec(F1), const2d((1, F1)), const2d((1, F1)),
                  const2d((F1, F2P)), const2d((1, F2P)),
                  const2d((1, F2P)), const2d((1, F2P)),
                  const2d((F2P, F3P)), const2d((1, F3P))],
        out_specs=row_spec(F3P),
        out_shape=jax.ShapeDtypeStruct((b_pad, F3P), jnp.float32),
        compiler_params=par,
        cost_estimate=pl.CostEstimate(
            flops=2 * b_pad * (F1 * F2P + F2P * F3P), transcendentals=0,
            bytes_accessed=int(b_pad * F1 * 2 + p["w2"].size * 2 + p["w3"].size * 2
                               + b_pad * F3P * 4)),
    )(h1, sc1, sh1, p["w2"], p["b2"], sc2, sh2, p["w3"], p["b3"])
    return logits[:B, :OUT_CLASSES]


# --------------------------------------------------------------------------- #
# Pure-JAX reference (mirrors the kernel numerics: bf16 MXU operands, f32 stats;
# bf16_h1=True mimics the tiled path's bf16 h1 round trip)
# --------------------------------------------------------------------------- #
def reference_forward(x_nchw, params, *, bf16_h1=False):
    B = x_nchw.shape[0]
    x = x_nchw.reshape(B, IN_FEATURES).astype(jnp.float32)

    def dot16(a, w):
        return jnp.dot(a.astype(jnp.bfloat16), w.astype(jnp.bfloat16),
                       preferred_element_type=jnp.float32)

    def fold(h, g, be):
        mu = jnp.sum(h, axis=0, keepdims=True) / B
        var = jnp.maximum(jnp.sum(h * h, axis=0, keepdims=True) / B - mu * mu, 0.0)
        scale = g * lax.rsqrt(var + EPS)
        return scale, be - mu * scale

    h1 = dot16(x, params["w1"]) + params["b1"]
    sc1, sh1 = fold(h1, params["g1"], params["be1"])          # stats from f32 h1
    h1u = h1.astype(jnp.bfloat16).astype(jnp.float32) if bf16_h1 else h1
    a1 = _leaky(h1u * sc1 + sh1)

    h2 = dot16(a1, params["w2"]) + params["b2"]
    sc2, sh2 = fold(h2, params["g2"], params["be2"])
    a2 = _leaky(h2 * sc2 + sh2)

    return dot16(a2, params["w3"]) + params["b3"]


if __name__ == "__main__":
    key = jax.random.PRNGKey(0)
    k_param, k_x1, k_x2 = jax.random.split(key, 3)

    params = init_params(k_param)
    prepared = prepare_params(params)

    # Path 1: small batch -> single fused kernel (MNIST-shaped NCHW input).
    x_small = jax.random.normal(k_x1, (8, 1, 28, 28), jnp.float32)
    out_small = jax.block_until_ready(batchnorm_model_forward(x_small, prepared))
    ref_small = reference_forward(x_small, params)
    assert out_small.shape == (8, 10)
    assert jnp.allclose(out_small, ref_small, atol=5e-3, rtol=5e-3), "fused path mismatch"

    # Path 2: batch-tiled two-phase-BN path with fc2 recompute
    # (tiny tiles to exercise grid + row masking on small shapes).
    x_big = jax.random.normal(k_x2, (40, 1, 28, 28), jnp.float32)
    out_big = jax.block_until_ready(
        batchnorm_model_forward(x_big, prepared, tile_rows=16, fused_max_rows=0))
    ref_big = reference_forward(x_big, params, bf16_h1=True)
    assert out_big.shape == (40, 10)
    assert jnp.allclose(out_big, ref_big, atol=5e-3, rtol=5e-3), "tiled path mismatch"

    print("KERNEL_OK")
</pallas_src>

<mosaic_0001>
module attributes {stable_mosaic.version = 11 : i64} {
  func.func @_fused_kernel(%arg0: memref<8x784xf32, #tpu.memory_space<vmem>>, %arg1: memref<784x128xbf16, #tpu.memory_space<vmem>>, %arg2: memref<1x128xf32, #tpu.memory_space<vmem>>, %arg3: memref<1x128xf32, #tpu.memory_space<vmem>>, %arg4: memref<1x128xf32, #tpu.memory_space<vmem>>, %arg5: memref<128x128xbf16, #tpu.memory_space<vmem>>, %arg6: memref<1x128xf32, #tpu.memory_space<vmem>>, %arg7: memref<1x128xf32, #tpu.memory_space<vmem>>, %arg8: memref<1x128xf32, #tpu.memory_space<vmem>>, %arg9: memref<128x128xbf16, #tpu.memory_space<vmem>>, %arg10: memref<1x128xf32, #tpu.memory_space<vmem>>, %arg11: memref<8x128xf32, #tpu.memory_space<vmem>>) attributes {dimension_semantics = [], scalar_prefetch = 0 : i64, scratch_operands = 0 : i64, tpu.core_type = #tpu.core_type<tc>} {
    %c0 = arith.constant 0 : index
    %c0_0 = arith.constant 0 : index
    %0 = vector.load %arg0[%c0, %c0_0] : memref<8x784xf32, #tpu.memory_space<vmem>>, vector<8x784xf32>
    %1 = arith.truncf %0 : vector<8x784xf32> to vector<8x784xbf16>
    %c0_1 = arith.constant 0 : index
    %c0_2 = arith.constant 0 : index
    %2 = vector.load %arg1[%c0_1, %c0_2] : memref<784x128xbf16, #tpu.memory_space<vmem>>, vector<784x128xbf16>
    %cst = arith.constant dense<0.000000e+00> : vector<8x128xf32>
    %3 = tpu.matmul %1, %2, %cst {dimension_numbers = #tpu.dot_dimension_numbers<[1], [0], [0], [1], [0, 0, 1, 1], [], []>} : vector<8x784xbf16>, vector<784x128xbf16>, vector<8x128xf32> -> vector<8x128xf32>
    %c0_3 = arith.constant 0 : index
    %c0_4 = arith.constant 0 : index
    %4 = vector.load %arg2[%c0_3, %c0_4] : memref<1x128xf32, #tpu.memory_space<vmem>>, vector<1x128xf32>
    %5 = vector.broadcast %4 : vector<1x128xf32> to vector<8x128xf32>
    %6 = arith.addf %3, %5 : vector<8x128xf32>
    %cst_5 = arith.constant dense<0.000000e+00> : vector<128xf32>
    %7 = vector.multi_reduction <add>, %6, %cst_5 [0] : vector<8x128xf32> to vector<128xf32>
    %8 = vector.shape_cast %7 : vector<128xf32> to vector<1x128xf32>
    %9 = arith.mulf %6, %6 : vector<8x128xf32>
    %cst_6 = arith.constant dense<0.000000e+00> : vector<128xf32>
    %10 = vector.multi_reduction <add>, %9, %cst_6 [0] : vector<8x128xf32> to vector<128xf32>
    %11 = vector.shape_cast %10 : vector<128xf32> to vector<1x128xf32>
    %c0_7 = arith.constant 0 : index
    %c0_8 = arith.constant 0 : index
    %12 = vector.load %arg3[%c0_7, %c0_8] : memref<1x128xf32, #tpu.memory_space<vmem>>, vector<1x128xf32>
    %c0_9 = arith.constant 0 : index
    %c0_10 = arith.constant 0 : index
    %13 = vector.load %arg4[%c0_9, %c0_10] : memref<1x128xf32, #tpu.memory_space<vmem>>, vector<1x128xf32>
    %cst_11 = arith.constant 1.250000e-01 : f32
    %14 = vector.broadcast %cst_11 : f32 to vector<1x128xf32>
    %15 = arith.mulf %8, %14 : vector<1x128xf32>
    %cst_12 = arith.constant 1.250000e-01 : f32
    %16 = vector.broadcast %cst_12 : f32 to vector<1x128xf32>
    %17 = arith.mulf %11, %16 : vector<1x128xf32>
    %18 = arith.mulf %15, %15 : vector<1x128xf32>
    %19 = arith.subf %17, %18 : vector<1x128xf32>
    %cst_13 = arith.constant 0.000000e+00 : f32
    %20 = vector.broadcast %cst_13 : f32 to vector<1x128xf32>
    %21 = arith.maximumf %19, %20 : vector<1x128xf32>
    %cst_14 = arith.constant 9.99999974E-6 : f32
    %22 = vector.broadcast %cst_14 : f32 to vector<1x128xf32>
    %23 = arith.addf %21, %22 : vector<1x128xf32>
    %24 = math.rsqrt %23 : vector<1x128xf32>
    %25 = arith.mulf %12, %24 : vector<1x128xf32>
    %26 = arith.mulf %15, %25 : vector<1x128xf32>
    %27 = arith.subf %13, %26 : vector<1x128xf32>
    %28 = vector.broadcast %25 : vector<1x128xf32> to vector<8x128xf32>
    %29 = arith.mulf %6, %28 : vector<8x128xf32>
    %30 = vector.broadcast %27 : vector<1x128xf32> to vector<8x128xf32>
    %31 = arith.addf %29, %30 : vector<8x128xf32>
    %cst_15 = arith.constant 0.000000e+00 : f32
    %32 = vector.broadcast %cst_15 : f32 to vector<8x128xf32>
    %33 = arith.cmpf oge, %31, %32 : vector<8x128xf32>
    %cst_16 = arith.constant 0.00999999977 : f32
    %34 = vector.broadcast %cst_16 : f32 to vector<8x128xf32>
    %35 = arith.mulf %34, %31 : vector<8x128xf32>
    %36 = arith.select %33, %31, %35 : vector<8x128xi1>, vector<8x128xf32>
    %37 = arith.truncf %36 : vector<8x128xf32> to vector<8x128xbf16>
    %c0_17 = arith.constant 0 : index
    %c0_18 = arith.constant 0 : index
    %38 = vector.load %arg5[%c0_17, %c0_18] : memref<128x128xbf16, #tpu.memory_space<vmem>>, vector<128x128xbf16>
    %cst_19 = arith.constant dense<0.000000e+00> : vector<8x128xf32>
    %39 = tpu.matmul %37, %38, %cst_19 {dimension_numbers = #tpu.dot_dimension_numbers<[1], [0], [0], [1], [0, 0, 1, 1], [], []>} : vector<8x128xbf16>, vector<128x128xbf16>, vector<8x128xf32> -> vector<8x128xf32>
    %c0_20 = arith.constant 0 : index
    %c0_21 = arith.constant 0 : index
    %40 = vector.load %arg6[%c0_20, %c0_21] : memref<1x128xf32, #tpu.memory_space<vmem>>, vector<1x128xf32>
    %41 = vector.broadcast %40 : vector<1x128xf32> to vector<8x128xf32>
    %42 = arith.addf %39, %41 : vector<8x128xf32>
    %cst_22 = arith.constant dense<0.000000e+00> : vector<128xf32>
    %43 = vector.multi_reduction <add>, %42, %cst_22 [0] : vector<8x128xf32> to vector<128xf32>
    %44 = vector.shape_cast %43 : vector<128xf32> to vector<1x128xf32>
    %45 = arith.mulf %42, %42 : vector<8x128xf32>
    %cst_23 = arith.constant dense<0.000000e+00> : vector<128xf32>
    %46 = vector.multi_reduction <add>, %45, %cst_23 [0] : vector<8x128xf32> to vector<128xf32>
    %47 = vector.shape_cast %46 : vector<128xf32> to vector<1x128xf32>
    %c0_24 = arith.constant 0 : index
    %c0_25 = arith.constant 0 : index
    %48 = vector.load %arg7[%c0_24, %c0_25] : memref<1x128xf32, #tpu.memory_space<vmem>>, vector<1x128xf32>
    %c0_26 = arith.constant 0 : index
    %c0_27 = arith.constant 0 : index
    %49 = vector.load %arg8[%c0_26, %c0_27] : memref<1x128xf32, #tpu.memory_space<vmem>>, vector<1x128xf32>
    %cst_28 = arith.constant 1.250000e-01 : f32
    %50 = vector.broadcast %cst_28 : f32 to vector<1x128xf32>
    %51 = arith.mulf %44, %50 : vector<1x128xf32>
    %cst_29 = arith.constant 1.250000e-01 : f32
    %52 = vector.broadcast %cst_29 : f32 to vector<1x128xf32>
    %53 = arith.mulf %47, %52 : vector<1x128xf32>
    %54 = arith.mulf %51, %51 : vector<1x128xf32>
    %55 = arith.subf %53, %54 : vector<1x128xf32>
    %cst_30 = arith.constant 0.000000e+00 : f32
    %56 = vector.broadcast %cst_30 : f32 to vector<1x128xf32>
    %57 = arith.maximumf %55, %56 : vector<1x128xf32>
    %cst_31 = arith.constant 9.99999974E-6 : f32
    %58 = vector.broadcast %cst_31 : f32 to vector<1x128xf32>
    %59 = arith.addf %57, %58 : vector<1x128xf32>
    %60 = math.rsqrt %59 : vector<1x128xf32>
    %61 = arith.mulf %48, %60 : vector<1x128xf32>
    %62 = arith.mulf %51, %61 : vector<1x128xf32>
    %63 = arith.subf %49, %62 : vector<1x128xf32>
    %64 = vector.broadcast %61 : vector<1x128xf32> to vector<8x128xf32>
    %65 = arith.mulf %42, %64 : vector<8x128xf32>
    %66 = vector.broadcast %63 : vector<1x128xf32> to vector<8x128xf32>
    %67 = arith.addf %65, %66 : vector<8x128xf32>
    %cst_32 = arith.constant 0.000000e+00 : f32
    %68 = vector.broadcast %cst_32 : f32 to vector<8x128xf32>
    %69 = arith.cmpf oge, %67, %68 : vector<8x128xf32>
    %cst_33 = arith.constant 0.00999999977 : f32
    %70 = vector.broadcast %cst_33 : f32 to vector<8x128xf32>
    %71 = arith.mulf %70, %67 : vector<8x128xf32>
    %72 = arith.select %69, %67, %71 : vector<8x128xi1>, vector<8x128xf32>
    %73 = arith.truncf %72 : vector<8x128xf32> to vector<8x128xbf16>
    %c0_34 = arith.constant 0 : index
    %c0_35 = arith.constant 0 : index
    %74 = vector.load %arg9[%c0_34, %c0_35] : memref<128x128xbf16, #tpu.memory_space<vmem>>, vector<128x128xbf16>
    %cst_36 = arith.constant dense<0.000000e+00> : vector<8x128xf32>
    %75 = tpu.matmul %73, %74, %cst_36 {dimension_numbers = #tpu.dot_dimension_numbers<[1], [0], [0], [1], [0, 0, 1, 1], [], []>} : vector<8x128xbf16>, vector<128x128xbf16>, vector<8x128xf32> -> vector<8x128xf32>
    %c0_37 = arith.constant 0 : index
    %c0_38 = arith.constant 0 : index
    %76 = vector.load %arg10[%c0_37, %c0_38] : memref<1x128xf32, #tpu.memory_space<vmem>>, vector<1x128xf32>
    %77 = vector.broadcast %76 : vector<1x128xf32> to vector<8x128xf32>
    %78 = arith.addf %75, %77 : vector<8x128xf32>
    %c0_39 = arith.constant 0 : index
    %c0_40 = arith.constant 0 : index
    %79 = vector.load %arg11[%c0_39, %c0_40] : memref<8x128xf32, #tpu.memory_space<vmem>>, vector<8x128xf32>
    tpu.vector_store %arg11[%c0_39, %c0_40], %78 {strides = array<i32>} : memref<8x128xf32, #tpu.memory_space<vmem>>, vector<8x128xf32>,
    return
  }
}

</mosaic_0001>

<llo_original>
// kernel: tpu_custom_call.1
$region0: #{tpu_custom_call.1}
  #allocation0 [shape = 'u32[]', space=smem, size = 0x4, offset = 0x4, fixed_abs, tag = 'smem constant byte address 0x4 - core index']
  #allocation1 [shape = 'u32[72,128]{1,0:T(1,128)}', space=vmem, size = 0x9000, scoped, tag = 'internal scratch']
  %s0 = inlined_call_operand.hbm [shape: f32[8,784], index: 0, kind: input, shape index: {}]
  %s1 = inlined_call_operand.hbm [shape: bf16[784,128], index: 1, kind: input, shape index: {}]
  %s2 = inlined_call_operand.vmem [shape: f32[1,128], index: 2, kind: input, shape index: {}]
  %s3 = inlined_call_operand.vmem [shape: f32[1,128], index: 3, kind: input, shape index: {}]
  %s4 = inlined_call_operand.vmem [shape: f32[1,128], index: 4, kind: input, shape index: {}]
  %s5 = inlined_call_operand.hbm [shape: bf16[128,128], index: 5, kind: input, shape index: {}]
  %s6 = inlined_call_operand.vmem [shape: f32[1,128], index: 6, kind: input, shape index: {}]
  %s7 = inlined_call_operand.vmem [shape: f32[1,128], index: 7, kind: input, shape index: {}]
  %s8 = inlined_call_operand.vmem [shape: f32[1,128], index: 8, kind: input, shape index: {}]
  %s9 = inlined_call_operand.hbm [shape: bf16[128,128], index: 9, kind: input, shape index: {}]
  %s10 = inlined_call_operand.vmem [shape: f32[1,128], index: 10, kind: input, shape index: {}]
  %s11 = inlined_call_operand.hbm [shape: f32[8,128], index: 11, kind: output, shape index: {}]
  %s12 = sld [smem:[#allocation0]]
  $region70: #{tpu_custom_call.1} parent=0
    _
  %s14 = ssub.s32 1, %s12
  %s15 = scalar_select 0, %s14, %s12
  $region1: #{tpu_custom_call.1} parent=0
    #allocation2 [shape = 'u8[28672]{0}', space=vmem, size = 0x7000, scoped, tag = 'input window, operand 0, single buffered']
    #allocation3 [shape = 's32[1]{0}', space=sflag, size = 0x4, scoped, tag = 'scoped memory for tpu_custom_call.1']
    #allocation4 [shape = 's32[1]{0}', space=sflag, size = 0x4, scoped, tag = 'scoped memory for tpu_custom_call.1']
    #allocation5 [shape = 'u8[200704]{0}', space=vmem, size = 0x31000, scoped, tag = 'input window, operand 1, single buffered']
    #allocation6 [shape = 's32[1]{0}', space=sflag, size = 0x4, scoped, tag = 'scoped memory for tpu_custom_call.1']
    #allocation7 [shape = 'u8[32768]{0}', space=vmem, size = 0x8000, scoped, tag = 'input window, operand 5, single buffered']
    #allocation8 [shape = 'u8[32768]{0}', space=vmem, size = 0x8000, scoped, tag = 'input window, operand 9, single buffered']
    #allocation9 [shape = 's32[1]{0}', space=sflag, size = 0x4, scoped, tag = 'scoped memory for tpu_custom_call.1']
    #allocation10 [shape = 'u8[4096]{0}', space=vmem, size = 0x1000, scoped, tag = 'output window, operand 0, single buffered']
    %16 = vsyncpa [#allocation3], 0
    %17 = vsyncpa [#allocation6], 0
    %18 = vsyncpa [#allocation9], 0
    %19 = vsyncpa [#allocation4], 0
    // Predicated region
    $region2: #{tpu_custom_call.1} parent=1 // pred_check
      _
    $region3: #{tpu_custom_call.1} parent=1 // pred_check_branch
      %21 = sbr.rel (0) target = $region5
    $region4: #{tpu_custom_call.1} parent=1 // pred_region
      %23 = vsyncadd [#allocation3], 0
      %s25 = sshll.u32 %s0, 4
      %s26 = int_to_ptr.hbm [resolvable:$true] %s25
      %s27 = sshll.u32 [#allocation2], 4
      %s28 = int_to_ptr.vmem [resolvable:$true] %s27
      %30 = dma.hbm_to_vmem [thread:$0]  %s26, 896, %s28, [#allocation3]
    $region5: #{tpu_custom_call.1} parent=1 // pred_fallthru
      _
    // Predicated region
    $region6: #{tpu_custom_call.1} parent=1 // pred_check
      _
    $region7: #{tpu_custom_call.1} parent=1 // pred_check_branch
      %32 = sbr.rel (0) target = $region9
    $region8: #{tpu_custom_call.1} parent=1 // pred_region
      %34 = vsyncadd [#allocation6], 0
      %s35 = sshll.u32 %s1, 4
      %s36 = int_to_ptr.hbm [resolvable:$true] %s35
      %s37 = sshll.u32 [#allocation5], 4
      %s38 = int_to_ptr.vmem [resolvable:$true] %s37
      %43 = dma.hbm_to_vmem [thread:$0]  %s36, 6272, %s38, [#allocation6], 64, 64, 4
    $region9: #{tpu_custom_call.1} parent=1 // pred_fallthru
      _
    // Predicated region
    $region10: #{tpu_custom_call.1} parent=1 // pred_check
      _
    $region11: #{tpu_custom_call.1} parent=1 // pred_check_branch
      %45 = sbr.rel (0) target = $region13
    $region12: #{tpu_custom_call.1} parent=1 // pred_region
      _
    $region13: #{tpu_custom_call.1} parent=1 // pred_fallthru
      _
    // Predicated region
    $region14: #{tpu_custom_call.1} parent=1 // pred_check
      _
    $region15: #{tpu_custom_call.1} parent=1 // pred_check_branch
      %47 = sbr.rel (0) target = $region17
    $region16: #{tpu_custom_call.1} parent=1 // pred_region
      _
    $region17: #{tpu_custom_call.1} parent=1 // pred_fallthru
      _
    // Predicated region
    $region18: #{tpu_custom_call.1} parent=1 // pred_check
      _
    $region19: #{tpu_custom_call.1} parent=1 // pred_check_branch
      %49 = sbr.rel (0) target = $region21
    $region20: #{tpu_custom_call.1} parent=1 // pred_region
      _
    $region21: #{tpu_custom_call.1} parent=1 // pred_fallthru
      _
    // Predicated region
    $region22: #{tpu_custom_call.1} parent=1 // pred_check
      _
    $region23: #{tpu_custom_call.1} parent=1 // pred_check_branch
      %51 = sbr.rel (0) target = $region25
    $region24: #{tpu_custom_call.1} parent=1 // pred_region
      %53 = vsyncadd [#allocation6], 0
      %s54 = sshll.u32 %s5, 4
      %s55 = int_to_ptr.hbm [resolvable:$true] %s54
      %s56 = sshll.u32 [#allocation7], 4
      %s57 = int_to_ptr.vmem [resolvable:$true] %s56
      %62 = dma.hbm_to_vmem [thread:$0]  %s55, 1024, %s57, [#allocation6], 64, 64, 4
    $region25: #{tpu_custom_call.1} parent=1 // pred_fallthru
      _
    // Predicated region
    $region26: #{tpu_custom_call.1} parent=1 // pred_check
      _
    $region27: #{tpu_custom_call.1} parent=1 // pred_check_branch
      %64 = sbr.rel (0) target = $region29
    $region28: #{tpu_custom_call.1} parent=1 // pred_region
      _
    $region29: #{tpu_custom_call.1} parent=1 // pred_fallthru
      _
    // Predicated region
    $region30: #{tpu_custom_call.1} parent=1 // pred_check
      _
    $region31: #{tpu_custom_call.1} parent=1 // pred_check_branch
      %66 = sbr.rel (0) target = $region33
    $region32: #{tpu_custom_call.1} parent=1 // pred_region
      _
    $region33: #{tpu_custom_call.1} parent=1 // pred_fallthru
      _
    // Predicated region
    $region34: #{tpu_custom_call.1} parent=1 // pred_check
      _
    $region35: #{tpu_custom_call.1} parent=1 // pred_check_branch
      %68 = sbr.rel (0) target = $region37
    $region36: #{tpu_custom_call.1} parent=1 // pred_region
      _
    $region37: #{tpu_custom_call.1} parent=1 // pred_fallthru
      _
    // Predicated region
    $region38: #{tpu_custom_call.1} parent=1 // pred_check
      _
    $region39: #{tpu_custom_call.1} parent=1 // pred_check_branch
      %70 = sbr.rel (0) target = $region41
    $region40: #{tpu_custom_call.1} parent=1 // pred_region
      %72 = vsyncadd [#allocation9], 0
      %s73 = sshll.u32 %s9, 4
      %s74 = int_to_ptr.hbm [resolvable:$true] %s73
      %s75 = sshll.u32 [#allocation8], 4
      %s76 = int_to_ptr.vmem [resolvable:$true] %s75
      %81 = dma.hbm_to_vmem [thread:$0]  %s74, 1024, %s76, [#allocation9], 64, 64, 4
    $region41: #{tpu_custom_call.1} parent=1 // pred_fallthru
      _
    // Predicated region
    $region42: #{tpu_custom_call.1} parent=1 // pred_check
      _
    $region43: #{tpu_custom_call.1} parent=1 // pred_check_branch
      %83 = sbr.rel (0) target = $region45
    $region44: #{tpu_custom_call.1} parent=1 // pred_region
      _
    $region45: #{tpu_custom_call.1} parent=1 // pred_fallthru
      _
    // Predicated region
    $region46: #{tpu_custom_call.1} parent=1 // pred_check
      _
    $region47: #{tpu_custom_call.1} parent=1 // pred_check_branch
      %85 = sbr.rel (0) target = $region49
    $region48: #{tpu_custom_call.1} parent=1 // pred_region
      %87 = dma.done [#allocation3], 896
    $region49: #{tpu_custom_call.1} parent=1 // pred_fallthru
      _
    // Predicated region
    $region50: #{tpu_custom_call.1} parent=1 // pred_check
      _
    $region51: #{tpu_custom_call.1} parent=1 // pred_check_branch
      %89 = sbr.rel (0) target = $region53
    $region52: #{tpu_custom_call.1} parent=1 // pred_region
      %91 = dma.done [#allocation6], 6272
    $region53: #{tpu_custom_call.1} parent=1 // pred_fallthru
      _
    // Predicated region
    $region54: #{tpu_custom_call.1} parent=1 // pred_check
      _
    $region55: #{tpu_custom_call.1} parent=1 // pred_check_branch
      %93 = sbr.rel (0) target = $region57
    $region56: #{tpu_custom_call.1} parent=1 // pred_region
      %95 = dma.done [#allocation6], 1024
    $region57: #{tpu_custom_call.1} parent=1 // pred_fallthru
      _
    // Predicated region
    $region58: #{tpu_custom_call.1} parent=1 // pred_check
      _
    $region59: #{tpu_custom_call.1} parent=1 // pred_check_branch
      %97 = sbr.rel (0) target = $region61
    $region60: #{tpu_custom_call.1} parent=1 // pred_region
      %99 = dma.done [#allocation9], 1024
    $region61: #{tpu_custom_call.1} parent=1 // pred_fallthru
      _
    %v101 = vld [vmem:[#allocation2] sm:$0xff]
    %v102 = vld [vmem:[#allocation2 + $0x8] sm:$0xff]
    %v103 = vld [vmem:[#allocation2 + $0x10] sm:$0xff]
    %v104 = vld [vmem:[#allocation2 + $0x18] sm:$0xff]
    %v105 = vld [vmem:[#allocation2 + $0x20] sm:$0xff]
    %v106 = vld [vmem:[#allocation2 + $0x28] sm:$0xff]
    %v107 = vld [vmem:[#allocation2 + $0x30] sm:$0xff]
    %v108 = vpack.c.bf16 %v101, %v101
    %v109 = vpack.c.bf16 %v102, %v102
    %v110 = vpack.c.bf16 %v103, %v103
    %v111 = vpack.c.bf16 %v104, %v104
    %v112 = vpack.c.bf16 %v105, %v105
    %v113 = vpack.c.bf16 %v106, %v106
    %v114 = vpack.c.bf16 %v107, %v107
    %v115 = vld [vmem:[#allocation5] sm:$0xf]
    %v116 = vld [vmem:[#allocation5 + $0x4] sm:$0xf]
    %v117 = vld [vmem:[#allocation5 + $0x8] sm:$0xf]
    %v118 = vld [vmem:[#allocation5 + $0xc] sm:$0xf]
    %v119 = vld [vmem:[#allocation5 + $0x10] sm:$0xf]
    %v120 = vld [vmem:[#allocation5 + $0x14] sm:$0xf]
    %v121 = vld [vmem:[#allocation5 + $0x18] sm:$0xf]
    %v122 = vld [vmem:[#allocation5 + $0x1c] sm:$0xf]
    %v123 = vld [vmem:[#allocation5 + $0x20] sm:$0xf]
    %v124 = vld [vmem:[#allocation5 + $0x24] sm:$0xf]
    %v125 = vld [vmem:[#allocation5 + $0x28] sm:$0xf]
    %v126 = vld [vmem:[#allocation5 + $0x2c] sm:$0xf]
    %v127 = vld [vmem:[#allocation5 + $0x30] sm:$0xf]
    %v128 = vld [vmem:[#allocation5 + $0x34] sm:$0xf]
    %v129 = vld [vmem:[#allocation5 + $0x38] sm:$0xf]
    %v130 = vld [vmem:[#allocation5 + $0x3c] sm:$0xf]
    %v131 = vld [vmem:[#allocation5 + $0x40] sm:$0xf]
    %v132 = vld [vmem:[#allocation5 + $0x44] sm:$0xf]
    %v133 = vld [vmem:[#allocation5 + $0x48] sm:$0xf]
    %v134 = vld [vmem:[#allocation5 + $0x4c] sm:$0xf]
    %v135 = vld [vmem:[#allocation5 + $0x50] sm:$0xf]
    %v136 = vld [vmem:[#allocation5 + $0x54] sm:$0xf]
    %v137 = vld [vmem:[#allocation5 + $0x58] sm:$0xf]
    %v138 = vld [vmem:[#allocation5 + $0x5c] sm:$0xf]
    %v139 = vld [vmem:[#allocation5 + $0x60] sm:$0xf]
    %v140 = vld [vmem:[#allocation5 + $0x64] sm:$0xf]
    %v141 = vld [vmem:[#allocation5 + $0x68] sm:$0xf]
    %v142 = vld [vmem:[#allocation5 + $0x6c] sm:$0xf]
    %v143 = vld [vmem:[#allocation5 + $0x70] sm:$0xf]
    %v144 = vld [vmem:[#allocation5 + $0x74] sm:$0xf]
    %v145 = vld [vmem:[#allocation5 + $0x78] sm:$0xf]
    %v146 = vld [vmem:[#allocation5 + $0x7c] sm:$0xf]
    %v147 = vld [vmem:[#allocation5 + $0x80] sm:$0xf]
    %v148 = vld [vmem:[#allocation5 + $0x84] sm:$0xf]
    %v149 = vld [vmem:[#allocation5 + $0x88] sm:$0xf]
    %v150 = vld [vmem:[#allocation5 + $0x8c] sm:$0xf]
    %v151 = vld [vmem:[#allocation5 + $0x90] sm:$0xf]
    %v152 = vld [vmem:[#allocation5 + $0x94] sm:$0xf]
    %v153 = vld [vmem:[#allocation5 + $0x98] sm:$0xf]
    %v154 = vld [vmem:[#allocation5 + $0x9c] sm:$0xf]
    %v155 = vld [vmem:[#allocation5 + $0xa0] sm:$0xf]
    %v156 = vld [vmem:[#allocation5 + $0xa4] sm:$0xf]
    %v157 = vld [vmem:[#allocation5 + $0xa8] sm:$0xf]
    %v158 = vld [vmem:[#allocation5 + $0xac] sm:$0xf]
    %v159 = vld [vmem:[#allocation5 + $0xb0] sm:$0xf]
    %v160 = vld [vmem:[#allocation5 + $0xb4] sm:$0xf]
    %v161 = vld [vmem:[#allocation5 + $0xb8] sm:$0xf]
    %v162 = vld [vmem:[#allocation5 + $0xbc] sm:$0xf]
    %v163 = vld [vmem:[#allocation5 + $0xc0] sm:$0xf]
    %v164 = vld [vmem:[#allocation5 + $0xc4] sm:$0xf]
    %v165 = vld [vmem:[#allocation5 + $0xc8] sm:$0xf]
    %v166 = vld [vmem:[#allocation5 + $0xcc] sm:$0xf]
    %v167 = vld [vmem:[#allocation5 + $0xd0] sm:$0xf]
    %v168 = vld [vmem:[#allocation5 + $0xd4] sm:$0xf]
    %v169 = vld [vmem:[#allocation5 + $0xd8] sm:$0xf]
    %v170 = vld [vmem:[#allocation5 + $0xdc] sm:$0xf]
    %v171 = vld [vmem:[#allocation5 + $0xe0] sm:$0xf]
    %v172 = vld [vmem:[#allocation5 + $0xe4] sm:$0xf]
    %v173 = vld [vmem:[#allocation5 + $0xe8] sm:$0xf]
    %v174 = vld [vmem:[#allocation5 + $0xec] sm:$0xf]
    %v175 = vld [vmem:[#allocation5 + $0xf0] sm:$0xf]
    %v176 = vld [vmem:[#allocation5 + $0xf4] sm:$0xf]
    %v177 = vld [vmem:[#allocation5 + $0xf8] sm:$0xf]
    %v178 = vld [vmem:[#allocation5 + $0xfc] sm:$0xf]
    %v179 = vld [vmem:[#allocation5 + $0x100] sm:$0xf]
    %v180 = vld [vmem:[#allocation5 + $0x104] sm:$0xf]
    %v181 = vld [vmem:[#allocation5 + $0x108] sm:$0xf]
    %v182 = vld [vmem:[#allocation5 + $0x10c] sm:$0xf]
    %v183 = vld [vmem:[#allocation5 + $0x110] sm:$0xf]
    %v184 = vld [vmem:[#allocation5 + $0x114] sm:$0xf]
    %v185 = vld [vmem:[#allocation5 + $0x118] sm:$0xf]
    %v186 = vld [vmem:[#allocation5 + $0x11c] sm:$0xf]
    %v187 = vld [vmem:[#allocation5 + $0x120] sm:$0xf]
    %v188 = vld [vmem:[#allocation5 + $0x124] sm:$0xf]
    %v189 = vld [vmem:[#allocation5 + $0x128] sm:$0xf]
    %v190 = vld [vmem:[#allocation5 + $0x12c] sm:$0xf]
    %v191 = vld [vmem:[#allocation5 + $0x130] sm:$0xf]
    %v192 = vld [vmem:[#allocation5 + $0x134] sm:$0xf]
    %v193 = vld [vmem:[#allocation5 + $0x138] sm:$0xf]
    %v194 = vld [vmem:[#allocation5 + $0x13c] sm:$0xf]
    %v195 = vld [vmem:[#allocation5 + $0x140] sm:$0xf]
    %v196 = vld [vmem:[#allocation5 + $0x144] sm:$0xf]
    %v197 = vld [vmem:[#allocation5 + $0x148] sm:$0xf]
    %v198 = vld [vmem:[#allocation5 + $0x14c] sm:$0xf]
    %v199 = vld [vmem:[#allocation5 + $0x150] sm:$0xf]
    %v200 = vld [vmem:[#allocation5 + $0x154] sm:$0xf]
    %v201 = vld [vmem:[#allocation5 + $0x158] sm:$0xf]
    %v202 = vld [vmem:[#allocation5 + $0x15c] sm:$0xf]
    %v203 = vld [vmem:[#allocation5 + $0x160] sm:$0xf]
    %v204 = vld [vmem:[#allocation5 + $0x164] sm:$0xf]
    %v205 = vld [vmem:[#allocation5 + $0x168] sm:$0xf]
    %v206 = vld [vmem:[#allocation5 + $0x16c] sm:$0xf]
    %v207 = vld [vmem:[#allocation5 + $0x170] sm:$0xf]
    %v208 = vld [vmem:[#allocation5 + $0x174] sm:$0xf]
    %v209 = vld [vmem:[#allocation5 + $0x178] sm:$0xf]
    %v210 = vld [vmem:[#allocation5 + $0x17c] sm:$0xf]
    %v211 = vld [vmem:[#allocation5 + $0x180] sm:$0xf]
    %v212 = vld [vmem:[#allocation5 + $0x184] sm:$0xf]
    %v213 = vld [vmem:[%s2] sm:$0x1]
    %v215 = vperm.slane %v213, 0
    %v315 = vunpack.c.l.b16 %v115
    %v316 = vunpack.c.l.b16 %v116
    %v317 = vunpack.c.l.b16 %v117
    %v318 = vunpack.c.l.b16 %v118
    %v319 = vunpack.c.l.b16 %v119
    %v320 = vunpack.c.l.b16 %v120
    %v321 = vunpack.c.l.b16 %v121
    %v322 = vunpack.c.l.b16 %v122
    %v323 = vunpack.c.l.b16 %v123
    %v324 = vunpack.c.l.b16 %v124
    %v325 = vunpack.c.l.b16 %v125
    %v326 = vunpack.c.l.b16 %v126
    %v327 = vunpack.c.l.b16 %v127
    %v328 = vunpack.c.l.b16 %v128
    %v329 = vunpack.c.l.b16 %v129
    %v330 = vunpack.c.l.b16 %v130
    %v331 = vunpack.c.l.b16 %v131
    %v332 = vunpack.c.l.b16 %v132
    %v333 = vunpack.c.l.b16 %v133
    %v334 = vunpack.c.l.b16 %v134
    %v335 = vunpack.c.l.b16 %v135
    %v336 = vunpack.c.l.b16 %v136
    %v337 = vunpack.c.l.b16 %v137
    %v338 = vunpack.c.l.b16 %v138
    %v339 = vunpack.c.l.b16 %v139
    %v340 = vunpack.c.l.b16 %v140
    %v341 = vunpack.c.l.b16 %v141
    %v342 = vunpack.c.l.b16 %v142
    %v343 = vunpack.c.l.b16 %v143
    %v344 = vunpack.c.l.b16 %v144
    %v345 = vunpack.c.l.b16 %v145
    %v346 = vunpack.c.l.b16 %v146
    %v347 = vunpack.c.l.b16 %v147
    %v348 = vunpack.c.l.b16 %v148
    %v349 = vunpack.c.l.b16 %v149
    %v350 = vunpack.c.l.b16 %v150
    %v351 = vunpack.c.l.b16 %v151
    %v352 = vunpack.c.l.b16 %v152
    %v353 = vunpack.c.l.b16 %v153
    %v354 = vunpack.c.l.b16 %v154
    %v355 = vunpack.c.l.b16 %v155
    %v356 = vunpack.c.l.b16 %v156
    %v357 = vunpack.c.l.b16 %v157
    %v358 = vunpack.c.l.b16 %v158
    %v359 = vunpack.c.l.b16 %v159
    %v360 = vunpack.c.l.b16 %v160
    %v361 = vunpack.c.l.b16 %v161
    %v362 = vunpack.c.l.b16 %v162
    %v363 = vunpack.c.l.b16 %v163
    %v364 = vunpack.c.l.b16 %v164
    %v365 = vunpack.c.l.b16 %v165
    %v366 = vunpack.c.l.b16 %v166
    %v367 = vunpack.c.l.b16 %v167
    %v368 = vunpack.c.l.b16 %v168
    %v369 = vunpack.c.l.b16 %v169
    %v370 = vunpack.c.l.b16 %v170
    %v371 = vunpack.c.l.b16 %v171
    %v372 = vunpack.c.l.b16 %v172
    %v373 = vunpack.c.l.b16 %v173
    %v374 = vunpack.c.l.b16 %v174
    %v375 = vunpack.c.l.b16 %v175
    %v376 = vunpack.c.l.b16 %v176
    %v377 = vunpack.c.l.b16 %v177
    %v378 = vunpack.c.l.b16 %v178
    %v379 = vunpack.c.l.b16 %v179
    %v380 = vunpack.c.l.b16 %v180
    %v381 = vunpack.c.l.b16 %v181
    %v382 = vunpack.c.l.b16 %v182
    %v383 = vunpack.c.l.b16 %v183
    %v384 = vunpack.c.l.b16 %v184
    %v385 = vunpack.c.l.b16 %v185
    %v386 = vunpack.c.l.b16 %v186
    %v387 = vunpack.c.l.b16 %v187
    %v388 = vunpack.c.l.b16 %v188
    %v389 = vunpack.c.l.b16 %v189
    %v390 = vunpack.c.l.b16 %v190
    %v391 = vunpack.c.l.b16 %v191
    %v392 = vunpack.c.l.b16 %v192
    %v393 = vunpack.c.l.b16 %v193
    %v394 = vunpack.c.l.b16 %v194
    %v395 = vunpack.c.l.b16 %v195
    %v396 = vunpack.c.l.b16 %v196
    %v397 = vunpack.c.l.b16 %v197
    %v398 = vunpack.c.l.b16 %v198
    %v399 = vunpack.c.l.b16 %v199
    %v400 = vunpack.c.l.b16 %v200
    %v401 = vunpack.c.l.b16 %v201
    %v402 = vunpack.c.l.b16 %v202
    %v403 = vunpack.c.l.b16 %v203
    %v404 = vunpack.c.l.b16 %v204
    %v405 = vunpack.c.l.b16 %v205
    %v406 = vunpack.c.l.b16 %v206
    %v407 = vunpack.c.l.b16 %v207
    %v408 = vunpack.c.l.b16 %v208
    %v409 = vunpack.c.l.b16 %v209
    %v410 = vunpack.c.l.b16 %v210
    %v411 = vunpack.c.l.b16 %v211
    %v412 = vunpack.c.l.b16 %v212
    %v413 = vpack.c.b16 %v316, %v315
    %v414 = vpack.c.b16 %v318, %v317
    %v415 = vpack.c.b16 %v320, %v319
    %v416 = vpack.c.b16 %v322, %v321
    %v417 = vpack.c.b16 %v324, %v323
    %v418 = vpack.c.b16 %v326, %v325
    %v419 = vpack.c.b16 %v328, %v327
    %v420 = vpack.c.b16 %v330, %v329
    %v421 = vpack.c.b16 %v332, %v331
    %v422 = vpack.c.b16 %v334, %v333
    %v423 = vpack.c.b16 %v336, %v335
    %v424 = vpack.c.b16 %v338, %v337
    %v425 = vpack.c.b16 %v340, %v339
    %v426 = vpack.c.b16 %v342, %v341
    %v427 = vpack.c.b16 %v344, %v343
    %v428 = vpack.c.b16 %v346, %v345
    %v429 = vpack.c.b16 %v348, %v347
    %v430 = vpack.c.b16 %v350, %v349
    %v431 = vpack.c.b16 %v352, %v351
    %v432 = vpack.c.b16 %v354, %v353
    %v433 = vpack.c.b16 %v356, %v355
    %v434 = vpack.c.b16 %v358, %v357
    %v435 = vpack.c.b16 %v360, %v359
    %v436 = vpack.c.b16 %v362, %v361
    %v437 = vpack.c.b16 %v364, %v363
    %v438 = vpack.c.b16 %v366, %v365
    %v439 = vpack.c.b16 %v368, %v367
    %v440 = vpack.c.b16 %v370, %v369
    %v441 = vpack.c.b16 %v372, %v371
    %v442 = vpack.c.b16 %v374, %v373
    %v443 = vpack.c.b16 %v376, %v375
    %v444 = vpack.c.b16 %v378, %v377
    %v445 = vpack.c.b16 %v380, %v379
    %v446 = vpack.c.b16 %v382, %v381
    %v447 = vpack.c.b16 %v384, %v383
    %v448 = vpack.c.b16 %v386, %v385
    %v449 = vpack.c.b16 %v388, %v387
    %v450 = vpack.c.b16 %v390, %v389
    %v451 = vpack.c.b16 %v392, %v391
    %v452 = vpack.c.b16 %v394, %v393
    %v453 = vpack.c.b16 %v396, %v395
    %v454 = vpack.c.b16 %v398, %v397
    %v455 = vpack.c.b16 %v400, %v399
    %v456 = vpack.c.b16 %v402, %v401
    %v457 = vpack.c.b16 %v404, %v403
    %v458 = vpack.c.b16 %v406, %v405
    %v459 = vpack.c.b16 %v408, %v407
    %v460 = vpack.c.b16 %v410, %v409
    %v461 = vpack.c.b16 %v412, %v411
    %vm511 = vcmask 130048
    %v513 = vsel %vm511, %v114, 0
    %515 = vmatpush.bf16.msra.mxu0 %v420
    %516 = vmatpush.bf16.msra.mxu0 %v419
    %517 = vmatpush.bf16.msra.mxu0 %v418
    %518 = vmatpush.bf16.msra.mxu0 %v417
    %519 = vmatpush.bf16.msra.mxu0 %v416
    %520 = vmatpush.bf16.msra.mxu0 %v415
    %521 = vmatpush.bf16.msra.mxu0 %v414
    %522 = vmatpush.bf16.msra.mxu0 %v413
    %523 = vmatmul.bf16.gmra.mxu0 %v108
    %v524 = vpop.f32.mrf.mxu0
    %v525 = vadd.f32 %v215, %v524
    %v526 = vpop.f32.mrf.mxu0
    %527 = vdwg.mxu0
    %528 = vmatpush.bf16.msra.mxu0 %v428
    %529 = vmatpush.bf16.msra.mxu0 %v427
    %530 = vmatpush.bf16.msra.mxu0 %v426
    %531 = vmatpush.bf16.msra.mxu0 %v425
    %532 = vmatpush.bf16.msra.mxu0 %v424
    %533 = vmatpush.bf16.msra.mxu0 %v423
    %534 = vmatpush.bf16.msra.mxu0 %v422
    %535 = vmatpush.bf16.msra.mxu0 %v421
    %536 = vmatmul.bf16.gmra.mxu0 %v109
    %v537 = vpop.f32.mrf.mxu0
    %v538 = vadd.f32 %v525, %v537
    %v539 = vpop.f32.mrf.mxu0
    %540 = vdwg.mxu0
    %541 = vmatpush.bf16.msra.mxu0 %v436
    %542 = vmatpush.bf16.msra.mxu0 %v435
    %543 = vmatpush.bf16.msra.mxu0 %v434
    %544 = vmatpush.bf16.msra.mxu0 %v433
    %545 = vmatpush.bf16.msra.mxu0 %v432
    %546 = vmatpush.bf16.msra.mxu0 %v431
    %547 = vmatpush.bf16.msra.mxu0 %v430
    %548 = vmatpush.bf16.msra.mxu0 %v429
    %549 = vmatmul.bf16.gmra.mxu0 %v110
    %v550 = vpop.f32.mrf.mxu0
    %v551 = vadd.f32 %v538, %v550
    %v552 = vpop.f32.mrf.mxu0
    %553 = vdwg.mxu0
    %554 = vmatpush.bf16.msra.mxu0 %v444
    %555 = vmatpush.bf16.msra.mxu0 %v443
    %556 = vmatpush.bf16.msra.mxu0 %v442
    %557 = vmatpush.bf16.msra.mxu0 %v441
    %558 = vmatpush.bf16.msra.mxu0 %v440
    %559 = vmatpush.bf16.msra.mxu0 %v439
    %560 = vmatpush.bf16.msra.mxu0 %v438
    %561 = vmatpush.bf16.msra.mxu0 %v437
    %562 = vmatmul.bf16.gmra.mxu0 %v111
    %v563 = vpop.f32.mrf.mxu0
    %v564 = vadd.f32 %v551, %v563
    %v565 = vpop.f32.mrf.mxu0
    %566 = vdwg.mxu0
    %567 = vmatpush.bf16.msra.mxu0 %v452
    %568 = vmatpush.bf16.msra.mxu0 %v451
    %569 = vmatpush.bf16.msra.mxu0 %v450
    %570 = vmatpush.bf16.msra.mxu0 %v449
    %571 = vmatpush.bf16.msra.mxu0 %v448
    %572 = vmatpush.bf16.msra.mxu0 %v447
    %573 = vmatpush.bf16.msra.mxu0 %v446
    %574 = vmatpush.bf16.msra.mxu0 %v445
    %575 = vmatmul.bf16.gmra.mxu0 %v112
    %v576 = vpop.f32.mrf.mxu0
    %v577 = vadd.f32 %v564, %v576
    %v578 = vpop.f32.mrf.mxu0
    %579 = vdwg.mxu0
    %580 = vmatpush.bf16.msra.mxu0 %v460
    %581 = vmatpush.bf16.msra.mxu0 %v459
    %582 = vmatpush.bf16.msra.mxu0 %v458
    %583 = vmatpush.bf16.msra.mxu0 %v457
    %584 = vmatpush.bf16.msra.mxu0 %v456
    %585 = vmatpush.bf16.msra.mxu0 %v455
    %586 = vmatpush.bf16.msra.mxu0 %v454
    %587 = vmatpush.bf16.msra.mxu0 %v453
    %588 = vmatmul.bf16.gmra.mxu0 %v113
    %v589 = vpop.f32.mrf.mxu0
    %v590 = vadd.f32 %v577, %v589
    %v591 = vpop.f32.mrf.mxu0
    %592 = vdwg.mxu0
    %593 = vmatpush.bf16.msra.mxu0 0
    %594 = vmatpush.bf16.msra.mxu0 0
    %595 = vmatpush.bf16.msra.mxu0 0
    %596 = vmatpush.bf16.msra.mxu0 0
    %597 = vmatpush.bf16.msra.mxu0 0
    %598 = vmatpush.bf16.msra.mxu0 0
    %599 = vmatpush.bf16.msra.mxu0 0
    %600 = vmatpush.bf16.msra.mxu0 %v461
    %601 = vmatmul.bf16.gmra.mxu0 %v513
    %v602 = vpop.f32.mrf.mxu0
    %v603 = vadd.f32 %v590, %v602
    %v604 = vpop.f32.mrf.mxu0
    %605 = vdwg.mxu0
    %v606 = vrot.slane %v603, 4
    %v607 = vadd.f32 %v603, %v606
    %v608 = vrot.slane %v607, 2
    %v609 = vadd.f32 %v607, %v608
    %v610 = vrot.slane %v609, 1
    %v611 = vadd.f32 %v609, %v610
    %v612 = vmul.f32 %v603, %v603
    %v613 = vrot.slane %v612, 4
    %v614 = vadd.f32 %v612, %v613
    %v615 = vrot.slane %v614, 2
    %v616 = vadd.f32 %v614, %v615
    %v617 = vrot.slane %v616, 1
    %v618 = vadd.f32 %v616, %v617
    %v619 = vld [vmem:[%s3] sm:$0x1]
    %v620 = vld [vmem:[%s4] sm:$0x1]
    %v621 = vmul.f32 %v611, 0.125
    %v622 = vmul.f32 %v618, 0.125
    %v623 = vmul.f32 %v621, %v621
    %v624 = vsub.f32 %v622, %v623
    %v625 = vmax.f32 %v624, 0.0
    %v626 = vadd.f32 %v625, 1e-05
    %v627 = vrsqrt.pop %v626
    %v628 = vmul.f32 %v627, %v626
    %v629 = vmul.f32 %v628, %v627
    %v630 = vmul.f32 0.5, %v629
    %v631 = vsub.f32 1.5, %v630
    %v632 = vmul.f32 %v627, %v631
    %vm633 = vweird.f32 %v626
    %vm634 = vweird.f32 %v627
    %vm635 = vmor %vm633, %vm634
    %v636 = vsel %vm635, %v627, %v632
    %v637 = vmul.f32 %v619, %v636
    %v638 = vmul.f32 %v621, %v637
    %v639 = vsub.f32 %v620, %v638
    %v641 = vperm.slane %v637, 0
    %v643 = vmul.f32 %v603, %v641
    %v645 = vperm.slane %v639, 0
    %v647 = vadd.f32 %v643, %v645
    %vm648 = vcmp.ge.f32.partialorder %v647, 0.0
    %v649 = vmul.f32 %v647, 0.01
    %v650 = vsel %vm648, %v647, %v649
    %v651 = vpack.c.bf16 %v650, %v650
    %v652 = vld [vmem:[#allocation7] sm:$0xf]
    %v653 = vld [vmem:[#allocation7 + $0x4] sm:$0xf]
    %v654 = vld [vmem:[#allocation7 + $0x8] sm:$0xf]
    %v655 = vld [vmem:[#allocation7 + $0xc] sm:$0xf]
    %v656 = vld [vmem:[#allocation7 + $0x10] sm:$0xf]
    %v657 = vld [vmem:[#allocation7 + $0x14] sm:$0xf]
    %v658 = vld [vmem:[#allocation7 + $0x18] sm:$0xf]
    %v659 = vld [vmem:[#allocation7 + $0x1c] sm:$0xf]
    %v660 = vld [vmem:[#allocation7 + $0x20] sm:$0xf]
    %v661 = vld [vmem:[#allocation7 + $0x24] sm:$0xf]
    %v662 = vld [vmem:[#allocation7 + $0x28] sm:$0xf]
    %v663 = vld [vmem:[#allocation7 + $0x2c] sm:$0xf]
    %v664 = vld [vmem:[#allocation7 + $0x30] sm:$0xf]
    %v665 = vld [vmem:[#allocation7 + $0x34] sm:$0xf]
    %v666 = vld [vmem:[#allocation7 + $0x38] sm:$0xf]
    %v667 = vld [vmem:[#allocation7 + $0x3c] sm:$0xf]
    %v668 = vld [vmem:[%s6] sm:$0x1]
    %v670 = vperm.slane %v668, 0
    %v688 = vunpack.c.l.b16 %v652
    %v689 = vunpack.c.l.b16 %v653
    %v690 = vunpack.c.l.b16 %v654
    %v691 = vunpack.c.l.b16 %v655
    %v692 = vunpack.c.l.b16 %v656
    %v693 = vunpack.c.l.b16 %v657
    %v694 = vunpack.c.l.b16 %v658
    %v695 = vunpack.c.l.b16 %v659
    %v696 = vunpack.c.l.b16 %v660
    %v697 = vunpack.c.l.b16 %v661
    %v698 = vunpack.c.l.b16 %v662
    %v699 = vunpack.c.l.b16 %v663
    %v700 = vunpack.c.l.b16 %v664
    %v701 = vunpack.c.l.b16 %v665
    %v702 = vunpack.c.l.b16 %v666
    %v703 = vunpack.c.l.b16 %v667
    %v704 = vpack.c.b16 %v689, %v688
    %v705 = vpack.c.b16 %v691, %v690
    %v706 = vpack.c.b16 %v693, %v692
    %v707 = vpack.c.b16 %v695, %v694
    %v708 = vpack.c.b16 %v697, %v696
    %v709 = vpack.c.b16 %v699, %v698
    %v710 = vpack.c.b16 %v701, %v700
    %v711 = vpack.c.b16 %v703, %v702
    %720 = vmatpush.bf16.msra.mxu0 %v711
    %721 = vmatpush.bf16.msra.mxu0 %v710
    %722 = vmatpush.bf16.msra.mxu0 %v709
    %723 = vmatpush.bf16.msra.mxu0 %v708
    %724 = vmatpush.bf16.msra.mxu0 %v707
    %725 = vmatpush.bf16.msra.mxu0 %v706
    %726 = vmatpush.bf16.msra.mxu0 %v705
    %727 = vmatpush.bf16.msra.mxu0 %v704
    %728 = vmatmul.bf16.gmra.mxu0 %v651
    %v729 = vpop.f32.mrf.mxu0
    %v730 = vadd.f32 %v670, %v729
    %v731 = vpop.f32.mrf.mxu0
    %732 = vdwg.mxu0
    %v733 = vrot.slane %v730, 4
    %v734 = vadd.f32 %v730, %v733
    %v735 = vrot.slane %v734, 2
    %v736 = vadd.f32 %v734, %v735
    %v737 = vrot.slane %v736, 1
    %v738 = vadd.f32 %v736, %v737
    %v739 = vmul.f32 %v730, %v730
    %v740 = vrot.slane %v739, 4
    %v741 = vadd.f32 %v739, %v740
    %v742 = vrot.slane %v741, 2
    %v743 = vadd.f32 %v741, %v742
    %v744 = vrot.slane %v743, 1
    %v745 = vadd.f32 %v743, %v744
    %v746 = vld [vmem:[%s7] sm:$0x1]
    %v747 = vld [vmem:[%s8] sm:$0x1]
    %v748 = vmul.f32 %v738, 0.125
    %v749 = vmul.f32 %v745, 0.125
    %v750 = vmul.f32 %v748, %v748
    %v751 = vsub.f32 %v749, %v750
    %v752 = vmax.f32 %v751, 0.0
    %v753 = vadd.f32 %v752, 1e-05
    %v754 = vrsqrt.pop %v753
    %v755 = vmul.f32 %v754, %v753
    %v756 = vmul.f32 %v755, %v754
    %v757 = vmul.f32 0.5, %v756
    %v758 = vsub.f32 1.5, %v757
    %v759 = vmul.f32 %v754, %v758
    %vm760 = vweird.f32 %v753
    %vm761 = vweird.f32 %v754
    %vm762 = vmor %vm760, %vm761
    %v763 = vsel %vm762, %v754, %v759
    %v764 = vmul.f32 %v746, %v763
    %v765 = vmul.f32 %v748, %v764
    %v766 = vsub.f32 %v747, %v765
    %v768 = vperm.slane %v764, 0
    %v770 = vmul.f32 %v730, %v768
    %v772 = vperm.slane %v766, 0
    %v774 = vadd.f32 %v770, %v772
    %vm775 = vcmp.ge.f32.partialorder %v774, 0.0
    %v776 = vmul.f32 %v774, 0.01
    %v777 = vsel %vm775, %v774, %v776
    %v778 = vpack.c.bf16 %v777, %v777
    %v779 = vld [vmem:[#allocation8] sm:$0xf]
    %v780 = vld [vmem:[#allocation8 + $0x4] sm:$0xf]
    %v781 = vld [vmem:[#allocation8 + $0x8] sm:$0xf]
    %v782 = vld [vmem:[#allocation8 + $0xc] sm:$0xf]
    %v783 = vld [vmem:[#allocation8 + $0x10] sm:$0xf]
    %v784 = vld [vmem:[#allocation8 + $0x14] sm:$0xf]
    %v785 = vld [vmem:[#allocation8 + $0x18] sm:$0xf]
    %v786 = vld [vmem:[#allocation8 + $0x1c] sm:$0xf]
    %v787 = vld [vmem:[#allocation8 + $0x20] sm:$0xf]
    %v788 = vld [vmem:[#allocation8 + $0x24] sm:$0xf]
    %v789 = vld [vmem:[#allocation8 + $0x28] sm:$0xf]
    %v790 = vld [vmem:[#allocation8 + $0x2c] sm:$0xf]
    %v791 = vld [vmem:[#allocation8 + $0x30] sm:$0xf]
    %v792 = vld [vmem:[#allocation8 + $0x34] sm:$0xf]
    %v793 = vld [vmem:[#allocation8 + $0x38] sm:$0xf]
    %v794 = vld [vmem:[#allocation8 + $0x3c] sm:$0xf]
    %v795 = vld [vmem:[%s10] sm:$0x1]
    %v797 = vperm.slane %v795, 0
    %v815 = vunpack.c.l.b16 %v779
    %v816 = vunpack.c.l.b16 %v780
    %v817 = vunpack.c.l.b16 %v781
    %v818 = vunpack.c.l.b16 %v782
    %v819 = vunpack.c.l.b16 %v783
    %v820 = vunpack.c.l.b16 %v784
    %v821 = vunpack.c.l.b16 %v785
    %v822 = vunpack.c.l.b16 %v786
    %v823 = vunpack.c.l.b16 %v787
    %v824 = vunpack.c.l.b16 %v788
    %v825 = vunpack.c.l.b16 %v789
    %v826 = vunpack.c.l.b16 %v790
    %v827 = vunpack.c.l.b16 %v791
    %v828 = vunpack.c.l.b16 %v792
    %v829 = vunpack.c.l.b16 %v793
    %v830 = vunpack.c.l.b16 %v794
    %v831 = vpack.c.b16 %v816, %v815
    %v832 = vpack.c.b16 %v818, %v817
    %v833 = vpack.c.b16 %v820, %v819
    %v834 = vpack.c.b16 %v822, %v821
    %v835 = vpack.c.b16 %v824, %v823
    %v836 = vpack.c.b16 %v826, %v825
    %v837 = vpack.c.b16 %v828, %v827
    %v838 = vpack.c.b16 %v830, %v829
    %847 = vmatpush.bf16.msra.mxu0 %v838
    %848 = vmatpush.bf16.msra.mxu0 %v837
    %849 = vmatpush.bf16.msra.mxu0 %v836
    %850 = vmatpush.bf16.msra.mxu0 %v835
    %851 = vmatpush.bf16.msra.mxu0 %v834
    %852 = vmatpush.bf16.msra.mxu0 %v833
    %853 = vmatpush.bf16.msra.mxu0 %v832
    %854 = vmatpush.bf16.msra.mxu0 %v831
    %855 = vmatmul.bf16.gmra.mxu0 %v778
    %v856 = vpop.f32.mrf.mxu0
    %v857 = vadd.f32 %v797, %v856
    %v858 = vpop.f32.mrf.mxu0
    %859 = vdwg.mxu0
    %860 = vst [vmem:[#allocation10] sm:$0xff] %v857
    // Predicated region
    $region62: #{tpu_custom_call.1} parent=1 // pred_check
      _
    $region63: #{tpu_custom_call.1} parent=1 // pred_check_branch
      %862 = sbr.rel (0) target = $region65
    $region64: #{tpu_custom_call.1} parent=1 // pred_region
      %864 = vsyncadd [#allocation4], 0
      %s866 = sshll.u32 [#allocation10], 4
      %s867 = int_to_ptr.vmem [resolvable:$true] %s866
      %s868 = sshll.u32 %s11, 4
      %s869 = int_to_ptr.hbm [resolvable:$true] %s868
      %871 = dma.vmem_to_hbm [thread:$0]  %s867, 128, %s869, [#allocation4]
    $region65: #{tpu_custom_call.1} parent=1 // pred_fallthru
      _
    // Predicated region
    $region66: #{tpu_custom_call.1} parent=1 // pred_check
      _
    $region67: #{tpu_custom_call.1} parent=1 // pred_check_branch
      %873 = sbr.rel (0) target = $region69
    $region68: #{tpu_custom_call.1} parent=1 // pred_region
      %875 = dma.done [#allocation4], 128
    $region69: #{tpu_custom_call.1} parent=1 // pred_fallthru
      _
    %876 = vsyncpa [#allocation3], 1
    %877 = vsyncpa [#allocation6], 1
    %878 = vsyncpa [#allocation9], 1
    %879 = vsyncpa [#allocation4], 1

</llo_original>
